<compile_context>
chip_gen: v6e
topology: v6e:2x2x1
jax: 0.10.0
libtpu: 0.0.40
codegen_flags: <defaults>
</compile_context>

<pallas_src>
import functools

import jax
import jax.numpy as jnp
from jax.experimental import pallas as pl
from jax.experimental.pallas import tpu as pltpu


def _round_up(x, m):
    return (x + m - 1) // m * m


def _sdpa_kernel(*refs, inv_temp, has_mask):
    if has_mask:
        q_ref, k_ref, v_ref, m_ref, out_ref, attn_ref = refs
    else:
        q_ref, k_ref, v_ref, out_ref, attn_ref = refs
        m_ref = None

    q = q_ref[...]                      # [TB, TQ, dk]  (native dtype)
    k = k_ref[...]                      # [TB, S,  dk]
    v = v_ref[...]                      # [TB, S,  dv]

    # scores = (q @ k^T) / temperature — contract last dims of both operands
    # (MXU consumes the transposed RHS natively; no XLU transpose).
    scores = jax.lax.dot_general(
        q, k,
        dimension_numbers=(((2,), (2,)), ((0,), (0,))),
        preferred_element_type=jnp.float32,
    ) * jnp.float32(inv_temp)           # [TB, TQ, S], f32

    if has_mask:
        scores = jnp.where(m_ref[...] == 0, jnp.float32(-1e9), scores)

    # Row softmax (max-subtracted, matches F.softmax numerics).
    scores = scores - jnp.max(scores, axis=-1, keepdims=True)
    e = jnp.exp(scores)
    denom = jnp.sum(e, axis=-1, keepdims=True)            # [TB, TQ, 1]
    r = pl.reciprocal(denom, approx=True)                  # EUP vrcp (free slot)
    r = r * (jnp.float32(2.0) - denom * r)                 # one Newton step -> ~f32 exact
    attn = e * r                                           # [TB, TQ, S], f32

    # Single cast, reused for both the store and the second matmul when possible.
    attn_v = attn.astype(v_ref.dtype)
    if attn_ref.dtype == v_ref.dtype:
        attn_ref[...] = attn_v
    else:
        attn_ref[...] = attn.astype(attn_ref.dtype)

    out = jax.lax.dot_general(
        attn_v, v,
        dimension_numbers=(((2,), (1,)), ((0,), (0,))),
        preferred_element_type=jnp.float32,
    )
    out_ref[...] = out.astype(out_ref.dtype)


def scaled_dot_product_attention(q, k, v, attn_mask, temperature, attn_dtype=None):
    """Pallas implementation of ScaledDotProductAttention.forward (eval mode).

    q, k: [B, H, S, dk]; v: [B, H, S, dv]; attn_mask: [B, H, S, S] or None
    (0 => masked). Returns (output [B, H, S, dv], attn [B, H, S, S]).

    attn_dtype=jnp.bfloat16 is the fast path (halves the dominant S^2 attn
    store); default keeps q.dtype to match the reference numerics exactly.
    """
    B, H, S, dk = q.shape
    dv = v.shape[-1]
    BH = B * H
    out_dtype = q.dtype
    attn_dtype = attn_dtype if attn_dtype is not None else q.dtype
    has_mask = attn_mask is not None

    # VMEM budget (explicit, chip-aware; v7x has only 64 MiB physical).
    try:
        vmem_cap = int(pltpu.get_tpu_info().vmem_capacity_bytes)
    except Exception:
        vmem_cap = 64 * 1024 * 1024  # v7x worst case
    vmem_limit = min(vmem_cap * 3 // 4, 100 * 1024 * 1024)
    budget = int(vmem_limit * 0.85)

    # Query-axis tiling: bounds VMEM to O(TQ * S) per step.  Small / moderate S
    # runs untiled (tq = S = full array dim, so no query padding and no unpad
    # copy of attn at all).  On tight-VMEM chips long S drops tq to 128.
    if S <= 512:
        tq = S
        sq_p = S
    else:
        tq = 128 if (vmem_cap <= 64 * 1024 * 1024 and S >= 1024) else 256
        sq_p = _round_up(S, tq)

    itemsize = jnp.dtype(q.dtype).itemsize
    mask_itemsize = jnp.dtype(attn_mask.dtype).itemsize if has_mask else 0
    attn_itemsize = jnp.dtype(attn_dtype).itemsize

    def est_bytes(tb):
        q_b = tb * tq * dk * itemsize
        k_b = tb * S * dk * itemsize
        v_b = tb * S * dv * itemsize
        m_b = tb * tq * S * mask_itemsize if has_mask else 0
        o_b = tb * tq * dv * itemsize
        a_b = tb * tq * S * attn_itemsize
        # 2x double-buffered pipelined streams + ~5 f32 [tq, S] in-kernel
        # intermediates (scores, exp, attn, v.dtype cast, compare/select temps).
        return 2 * (q_b + k_b + v_b + m_b + o_b + a_b) + 5 * tb * tq * S * 4

    # Batch several (batch, head) slices per grid step — dominant lever for
    # small S / small head dims (amortizes ~0.35us per-step overhead).  Any
    # divisor of BH is allowed; cap at BH//2 so the parallel grid stays >= 2
    # (keeps both v7x TensorCores fed; negligible cost on single-core chips).
    tb_cap = max(1, BH // 2)
    tb = 1
    for cand in sorted((d for d in range(1, BH + 1) if BH % d == 0), reverse=True):
        if cand <= tb_cap and est_bytes(cand) <= budget:
            tb = cand
            break

    # Flatten (B, H) — a leading-dim reshape is a bitcast, no HBM pass.
    qf = q.reshape(BH, S, dk)
    kf = k.reshape(BH, S, dk)
    vf = v.reshape(BH, S, dv)
    if sq_p != S:
        qf = jnp.pad(qf, ((0, 0), (0, sq_p - S), (0, 0)))

    inputs = [qf, kf, vf]
    in_specs = [
        pl.BlockSpec((tb, tq, dk), lambda b, qi: (b, qi, 0)),
        pl.BlockSpec((tb, S, dk), lambda b, qi: (b, 0, 0)),   # K resident across qi
        pl.BlockSpec((tb, S, dv), lambda b, qi: (b, 0, 0)),   # V resident across qi
    ]
    if has_mask:
        mf = attn_mask.reshape(BH, S, S)                       # native dtype, no conversion
        if sq_p != S:
            mf = jnp.pad(mf, ((0, 0), (0, sq_p - S), (0, 0)))
        inputs.append(mf)
        in_specs.append(pl.BlockSpec((tb, tq, S), lambda b, qi: (b, qi, 0)))

    kernel = functools.partial(
        _sdpa_kernel,
        inv_temp=1.0 / float(temperature),
        has_mask=has_mask,
    )

    out_p, attn_p = pl.pallas_call(
        kernel,
        out_shape=(
            jax.ShapeDtypeStruct((BH, sq_p, dv), out_dtype),
            jax.ShapeDtypeStruct((BH, sq_p, S), attn_dtype),
        ),
        grid_spec=pltpu.PrefetchScalarGridSpec(
            num_scalar_prefetch=0,
            grid=(BH // tb, sq_p // tq),
            in_specs=in_specs,
            out_specs=[
                pl.BlockSpec((tb, tq, dv), lambda b, qi: (b, qi, 0)),
                pl.BlockSpec((tb, tq, S), lambda b, qi: (b, qi, 0)),
            ],
        ),
        compiler_params=pltpu.CompilerParams(
            dimension_semantics=("parallel", "parallel"),
            vmem_limit_bytes=vmem_limit,
        ),
    )(*inputs)

    # Only the (rare) query-axis padding needs slicing; the key axis is never
    # padded, so no S^2-scale unpad copy of attn is made.
    if sq_p != S:
        out_p = out_p[:, :S]
        attn_p = attn_p[:, :S]
    out = out_p.reshape(B, H, S, dv)
    attn = attn_p.reshape(B, H, S, S)
    return out, attn


def _reference(q, k, v, attn_mask, temperature):
    scores = jnp.einsum("bhsd,bhtd->bhst", q / temperature, k)
    if attn_mask is not None:
        scores = jnp.where(attn_mask == 0, -1e9, scores)
    attn = jax.nn.softmax(scores, axis=-1)
    out = jnp.einsum("bhst,bhtd->bhsd", attn, v)
    return out, attn


if __name__ == "__main__":
    key = jax.random.PRNGKey(0)
    B, H, S, dk, dv = 2, 4, 8, 32, 32
    temperature = float(dk) ** 0.5

    kq, kk, kv, km = jax.random.split(key, 4)
    q = jax.random.normal(kq, (B, H, S, dk), dtype=jnp.float32)
    k = jax.random.normal(kk, (B, H, S, dk), dtype=jnp.float32)
    v = jax.random.normal(kv, (B, H, S, dv), dtype=jnp.float32)
    # Random mask with some zeros (0 => masked out); diagonal always unmasked.
    attn_mask = (jax.random.uniform(km, (B, H, S, S)) > 0.2).astype(jnp.float32)
    eye = jnp.eye(S, dtype=jnp.float32)[None, None]
    attn_mask = jnp.maximum(attn_mask, eye)

    out, attn = scaled_dot_product_attention(q, k, v, attn_mask, temperature)
    out = jax.block_until_ready(out)
    attn = jax.block_until_ready(attn)

    ref_out, ref_attn = _reference(q, k, v, attn_mask, temperature)
    # Slightly relaxed tolerance: the softmax denominator uses the EUP
    # approximate reciprocal (+1 Newton step); structural bugs would be O(1).
    assert jnp.allclose(out, ref_out, atol=1e-3, rtol=1e-3), "output mismatch"
    assert jnp.allclose(attn, ref_attn, atol=1e-3, rtol=1e-3), "attn mismatch"

    print("KERNEL_OK")
</pallas_src>

<mosaic_0001>
module attributes {stable_mosaic.version = 11 : i64} {
  func.func @_sdpa_kernel(%arg0: i32, %arg1: i32, %arg2: memref<4x8x32xf32, #tpu.memory_space<vmem>>, %arg3: memref<4x8x32xf32, #tpu.memory_space<vmem>>, %arg4: memref<4x8x32xf32, #tpu.memory_space<vmem>>, %arg5: memref<4x8x8xf32, #tpu.memory_space<vmem>>, %arg6: memref<4x8x32xf32, #tpu.memory_space<vmem>>, %arg7: memref<4x8x8xf32, #tpu.memory_space<vmem>>) attributes {dimension_semantics = [#tpu.dimension_semantics<parallel>, #tpu.dimension_semantics<parallel>], iteration_bounds = array<i64: 2, 1>, scalar_prefetch = 0 : i64, scratch_operands = 0 : i64, tpu.core_type = #tpu.core_type<tc>, window_params = [{transform_indices = @transform_0, window_bounds = array<i64: 4, 8, 32>}, {transform_indices = @transform_1, window_bounds = array<i64: 4, 8, 32>}, {transform_indices = @transform_2, window_bounds = array<i64: 4, 8, 32>}, {transform_indices = @transform_3, window_bounds = array<i64: 4, 8, 8>}, {transform_indices = @transform_4, window_bounds = array<i64: 4, 8, 32>}, {transform_indices = @transform_5, window_bounds = array<i64: 4, 8, 8>}]} {
    %c0 = arith.constant 0 : index
    %c0_0 = arith.constant 0 : index
    %c0_1 = arith.constant 0 : index
    %0 = vector.load %arg2[%c0, %c0_0, %c0_1] : memref<4x8x32xf32, #tpu.memory_space<vmem>>, vector<4x8x32xf32>
    %c0_2 = arith.constant 0 : index
    %c0_3 = arith.constant 0 : index
    %c0_4 = arith.constant 0 : index
    %1 = vector.load %arg3[%c0_2, %c0_3, %c0_4] : memref<4x8x32xf32, #tpu.memory_space<vmem>>, vector<4x8x32xf32>
    %c0_5 = arith.constant 0 : index
    %c0_6 = arith.constant 0 : index
    %c0_7 = arith.constant 0 : index
    %2 = vector.load %arg4[%c0_5, %c0_6, %c0_7] : memref<4x8x32xf32, #tpu.memory_space<vmem>>, vector<4x8x32xf32>
    %cst = arith.constant dense<0.000000e+00> : vector<4x8x8xf32>
    %3 = tpu.matmul %0, %1, %cst {dimension_numbers = #tpu.dot_dimension_numbers<[2], [2], [1], [1], [0, 0, 0, 1, 1, 1], [0], [0]>} : vector<4x8x32xf32>, vector<4x8x32xf32>, vector<4x8x8xf32> -> vector<4x8x8xf32>
    %cst_8 = arith.constant 0.176776692 : f32
    %4 = vector.broadcast %cst_8 : f32 to vector<4x8x8xf32>
    %5 = arith.mulf %3, %4 : vector<4x8x8xf32>
    %c0_9 = arith.constant 0 : index
    %c0_10 = arith.constant 0 : index
    %c0_11 = arith.constant 0 : index
    %6 = vector.load %arg5[%c0_9, %c0_10, %c0_11] : memref<4x8x8xf32, #tpu.memory_space<vmem>>, vector<4x8x8xf32>
    %cst_12 = arith.constant 0.000000e+00 : f32
    %7 = vector.broadcast %cst_12 : f32 to vector<4x8x8xf32>
    %8 = arith.cmpf oeq, %6, %7 : vector<4x8x8xf32>
    %cst_13 = arith.constant -1.000000e+09 : f32
    %9 = vector.broadcast %cst_13 : f32 to vector<4x8x8xf32>
    %10 = arith.select %8, %9, %5 : vector<4x8x8xi1>, vector<4x8x8xf32>
    %cst_14 = arith.constant dense<0xFF800000> : vector<4x8xf32>
    %11 = vector.multi_reduction <maximumf>, %10, %cst_14 [2] : vector<4x8x8xf32> to vector<4x8xf32>
    %12 = vector.shape_cast %11 : vector<4x8xf32> to vector<4x8x1xf32>
    %13 = vector.broadcast %12 : vector<4x8x1xf32> to vector<4x8x8xf32>
    %14 = arith.subf %10, %13 : vector<4x8x8xf32>
    %15 = math.exp %14 : vector<4x8x8xf32>
    %cst_15 = arith.constant dense<0.000000e+00> : vector<4x8xf32>
    %16 = vector.multi_reduction <add>, %15, %cst_15 [2] : vector<4x8x8xf32> to vector<4x8xf32>
    %17 = vector.shape_cast %16 : vector<4x8xf32> to vector<4x8x1xf32>
    %18 = tpu.reciprocal %17 {approx = true} : vector<4x8x1xf32> -> vector<4x8x1xf32>
    %19 = arith.mulf %17, %18 : vector<4x8x1xf32>
    %cst_16 = arith.constant 2.000000e+00 : f32
    %20 = vector.broadcast %cst_16 : f32 to vector<4x8x1xf32>
    %21 = arith.subf %20, %19 : vector<4x8x1xf32>
    %22 = arith.mulf %18, %21 : vector<4x8x1xf32>
    %23 = vector.broadcast %22 : vector<4x8x1xf32> to vector<4x8x8xf32>
    %24 = arith.mulf %15, %23 : vector<4x8x8xf32>
    %c0_17 = arith.constant 0 : index
    %c0_18 = arith.constant 0 : index
    %c0_19 = arith.constant 0 : index
    %25 = vector.load %arg7[%c0_17, %c0_18, %c0_19] : memref<4x8x8xf32, #tpu.memory_space<vmem>>, vector<4x8x8xf32>
    tpu.vector_store %arg7[%c0_17, %c0_18, %c0_19], %24 {strides = array<i32>} : memref<4x8x8xf32, #tpu.memory_space<vmem>>, vector<4x8x8xf32>,
    %cst_20 = arith.constant dense<0.000000e+00> : vector<4x8x32xf32>
    %26 = tpu.matmul %24, %2, %cst_20 {dimension_numbers = #tpu.dot_dimension_numbers<[2], [1], [1], [2], [0, 0, 0, 1, 1, 2], [0], [0]>} : vector<4x8x8xf32>, vector<4x8x32xf32>, vector<4x8x32xf32> -> vector<4x8x32xf32>
    %c0_21 = arith.constant 0 : index
    %c0_22 = arith.constant 0 : index
    %c0_23 = arith.constant 0 : index
    %27 = vector.load %arg6[%c0_21, %c0_22, %c0_23] : memref<4x8x32xf32, #tpu.memory_space<vmem>>, vector<4x8x32xf32>
    tpu.vector_store %arg6[%c0_21, %c0_22, %c0_23], %26 {strides = array<i32>} : memref<4x8x32xf32, #tpu.memory_space<vmem>>, vector<4x8x32xf32>,
    return
  }
  func.func @transform_0(%arg0: i32, %arg1: i32) -> (i32, i32, i32) {
    %c0_i32 = arith.constant 0 : i32
    %c0_i32_0 = arith.constant 0 : i32
    return %arg0, %arg1, %c0_i32 : i32, i32, i32
  }
  func.func @transform_1(%arg0: i32, %arg1: i32) -> (i32, i32, i32) {
    %c0_i32 = arith.constant 0 : i32
    %c0_i32_0 = arith.constant 0 : i32
    %c0_i32_1 = arith.constant 0 : i32
    return %arg0, %c0_i32, %c0_i32_0 : i32, i32, i32
  }
  func.func @transform_2(%arg0: i32, %arg1: i32) -> (i32, i32, i32) {
    %c0_i32 = arith.constant 0 : i32
    %c0_i32_0 = arith.constant 0 : i32
    %c0_i32_1 = arith.constant 0 : i32
    return %arg0, %c0_i32, %c0_i32_0 : i32, i32, i32
  }
  func.func @transform_3(%arg0: i32, %arg1: i32) -> (i32, i32, i32) {
    %c0_i32 = arith.constant 0 : i32
    %c0_i32_0 = arith.constant 0 : i32
    return %arg0, %arg1, %c0_i32 : i32, i32, i32
  }
  func.func @transform_4(%arg0: i32, %arg1: i32) -> (i32, i32, i32) {
    %c0_i32 = arith.constant 0 : i32
    %c0_i32_0 = arith.constant 0 : i32
    return %arg0, %arg1, %c0_i32 : i32, i32, i32
  }
  func.func @transform_5(%arg0: i32, %arg1: i32) -> (i32, i32, i32) {
    %c0_i32 = arith.constant 0 : i32
    %c0_i32_0 = arith.constant 0 : i32
    return %arg0, %arg1, %c0_i32 : i32, i32, i32
  }
}

</mosaic_0001>

<llo_original>
// kernel: tpu_custom_call.1
$region0: #{tpu_custom_call.1}
  #allocation0 [shape = 'u32[]', space=smem, size = 0x4, offset = 0x4, fixed_abs, tag = 'smem constant byte address 0x4 - core index']
  #allocation1 [shape = 'u32[144,128]{1,0:T(1,128)}', space=vmem, size = 0x12000, scoped, tag = 'internal scratch']
  %s0 = inlined_call_operand.hbm [shape: f32[8,8,32], index: 0, kind: input, shape index: {}]
  %s1 = inlined_call_operand.hbm [shape: f32[8,8,32], index: 1, kind: input, shape index: {}]
  %s2 = inlined_call_operand.hbm [shape: f32[8,8,32], index: 2, kind: input, shape index: {}]
  %s3 = inlined_call_operand.hbm [shape: f32[8,8,8], index: 3, kind: input, shape index: {}]
  %s4 = inlined_call_operand.hbm [shape: f32[8,8,32], index: 4, kind: output, shape index: {0}]
  %s5 = inlined_call_operand.hbm [shape: f32[8,8,8], index: 5, kind: output, shape index: {1}]
  %6 = xla_tuple %s4, %s5
  %s7 = sld [smem:[#allocation0]]
  $region73: #{tpu_custom_call.1} parent=0
    _
  %s9 = ssub.s32 1, %s7
  %s10 = scalar_select 0, %s9, %s7
  $region1: #{tpu_custom_call.1} parent=0
    #allocation2 [shape = 'u8[32768]{0}', space=vmem, size = 0x8000, scoped, tag = 'input window, operand 0']
    #allocation3 [shape = 's32[2]{0}', space=sflag, size = 0x8, scoped, tag = 'scoped memory for tpu_custom_call.1']
    #allocation4 [shape = 's32[2]{0}', space=sflag, size = 0x8, scoped, tag = 'scoped memory for tpu_custom_call.1']
    #allocation5 [shape = 'u8[32768]{0}', space=vmem, size = 0x8000, scoped, tag = 'input window, operand 1']
    #allocation6 [shape = 's32[2]{0}', space=sflag, size = 0x8, scoped, tag = 'scoped memory for tpu_custom_call.1']
    #allocation7 [shape = 'u8[32768]{0}', space=vmem, size = 0x8000, scoped, tag = 'input window, operand 2']
    #allocation8 [shape = 'u8[32768]{0}', space=vmem, size = 0x8000, scoped, tag = 'input window, operand 3']
    #allocation9 [shape = 's32[2]{0}', space=sflag, size = 0x8, scoped, tag = 'scoped memory for tpu_custom_call.1']
    #allocation10 [shape = 'u8[32768]{0}', space=vmem, size = 0x8000, scoped, tag = 'output window, operand 0']
    #allocation11 [shape = 'u8[32768]{0}', space=vmem, size = 0x8000, scoped, tag = 'output window, operand 1']
    #allocation12 [shape = 's32[2]{0}', space=sflag, size = 0x8, scoped, tag = 'scoped memory for tpu_custom_call.1']
    %11 = vsyncpa [#allocation3], 0
    %s12 = scalar_lea.sflag [#allocation3], 1
    %13 = vsyncpa %s12, 0
    %14 = vsyncpa [#allocation6], 0
    %s15 = scalar_lea.sflag [#allocation6], 1
    %16 = vsyncpa %s15, 0
    %17 = vsyncpa [#allocation9], 0
    %s18 = scalar_lea.sflag [#allocation9], 1
    %19 = vsyncpa %s18, 0
    %20 = vsyncpa [#allocation4], 0
    %s21 = scalar_lea.sflag [#allocation4], 1
    %22 = vsyncpa %s21, 0
    %23 = vsyncpa [#allocation12], 0
    %s24 = scalar_lea.sflag [#allocation12], 1
    %25 = vsyncpa %s24, 0
    loop: start=0, step=1, limit=4
    $region2: #{tpu_custom_call.1} parent=1 // loop_pre_header
      _
    $region3: #{tpu_custom_call.1} parent=1 // loop_header
      %s27 = sphi 0, %s31
      %p28 = scmp.ge.s32.totalorder %s27, 4
      %s34 = sphi 0, %s46
      %s35 = sphi 0, %s42
      %s36 = sphi 0, %s34
      %s37 = sphi 0, %s35
      %s38 = sphi 0, %s36
      %s39 = sphi 0, %s37
      %s51 = sphi 0, %s53
      %s54 = sphi 0, %s51
      %s55 = sphi 0, %s54
      %s71 = sphi 0, %s55
      %s77 = sphi 0, %s79
      %s80 = sphi 0, %s77
      %s81 = sphi 0, %s80
      %s97 = sphi 0, %s81
      %s103 = sphi 0, %s105
      %s106 = sphi 0, %s103
      %s107 = sphi 0, %s106
      %s123 = sphi 0, %s107
      %s131 = sphi 0, %s133
      %s134 = sphi 0, %s131
      %s135 = sphi 0, %s134
      %s151 = sphi 0, %s135
      %s159 = sphi 0, %s161
      %s162 = sphi 0, %s159
      %s163 = sphi 0, %s162
      %s179 = sphi 0, %s163
      %s187 = sphi 0, %s189
      %s190 = sphi 0, %s187
      %s191 = sphi 0, %s190
      %s207 = sphi 0, %s191
    $region4: #{tpu_custom_call.1} parent=1 // loop_header_branch
      %30 = sbr.rel (%p28) target = $region8
    $region5: #{tpu_custom_call.1} parent=1 // loop_body
      %s32 = ssub.s32 %s27, 1
      %s33 = ssub.s32 %s27, 2
      %s40 = sadd.s32 1, %s35
      %p41 = scmp.ge.s32.totalorder %s40, 1
      %s42 = scalar_select %p41, 0, %s40
      %s43 = sadd.s32 1, %s34
      %s44 = scalar_select %p41, %s43, %s34
      %p45 = scmp.ge.s32.totalorder %s44, 2
      %s46 = scalar_select %p45, 0, %s44
      %s47 = ssub.s32 %s34, %s46
      %s48 = ssub.s32 %s35, %s42
      %s49 = sor.u32 %s47, %s48
      %p50 = scmp.eq.s32.totalorder %s49, 0
      %s52 = sadd.s32 %s51, 1
      %s53 = scalar_select %p50, %s51, %s52
      %p56 = pneg %p50
      %p57 = scmp.eq.s32.totalorder %s27, 1
      %p58 = por %p56, %p57
      %p59 = scmp.ne.s32.totalorder %s51, %s54
      %p60 = scmp.eq.s32.totalorder %s27, 0
      %p61 = por %p59, %p60
      %p62 = scmp.ne.s32.totalorder %s51, %s54
      %p63 = scmp.eq.s32.totalorder %s32, 1
      %p64 = por %p62, %p63
      %p65 = scmp.ne.s32.totalorder %s54, %s55
      %p66 = scmp.eq.s32.totalorder %s32, 0
      %p67 = por %p65, %p66
      %p68 = scmp.ne.s32.totalorder %s54, %s55
      %p69 = scmp.eq.s32.totalorder %s33, 1
      %p70 = por %p68, %p69
      %p72 = scmp.ne.s32.totalorder %s55, %s71
      %p73 = scmp.eq.s32.totalorder %s33, 0
      %p74 = por %p72, %p73
      %s75 = ssub.s32 %s34, %s46
      %p76 = scmp.eq.s32.totalorder %s75, 0
      %s78 = sadd.s32 %s77, 1
      %s79 = scalar_select %p76, %s77, %s78
      %p82 = pneg %p76
      %p83 = scmp.eq.s32.totalorder %s27, 1
      %p84 = por %p82, %p83
      %p85 = scmp.ne.s32.totalorder %s77, %s80
      %p86 = scmp.eq.s32.totalorder %s27, 0
      %p87 = por %p85, %p86
      %p88 = scmp.ne.s32.totalorder %s77, %s80
      %p89 = scmp.eq.s32.totalorder %s32, 1
      %p90 = por %p88, %p89
      %p91 = scmp.ne.s32.totalorder %s80, %s81
      %p92 = scmp.eq.s32.totalorder %s32, 0
      %p93 = por %p91, %p92
      %p94 = scmp.ne.s32.totalorder %s80, %s81
      %p95 = scmp.eq.s32.totalorder %s33, 1
      %p96 = por %p94, %p95
      %p98 = scmp.ne.s32.totalorder %s81, %s97
      %p99 = scmp.eq.s32.totalorder %s33, 0
      %p100 = por %p98, %p99
      %s101 = ssub.s32 %s34, %s46
      %p102 = scmp.eq.s32.totalorder %s101, 0
      %s104 = sadd.s32 %s103, 1
      %s105 = scalar_select %p102, %s103, %s104
      %p108 = pneg %p102
      %p109 = scmp.eq.s32.totalorder %s27, 1
      %p110 = por %p108, %p109
      %p111 = scmp.ne.s32.totalorder %s103, %s106
      %p112 = scmp.eq.s32.totalorder %s27, 0
      %p113 = por %p111, %p112
      %p114 = scmp.ne.s32.totalorder %s103, %s106
      %p115 = scmp.eq.s32.totalorder %s32, 1
      %p116 = por %p114, %p115
      %p117 = scmp.ne.s32.totalorder %s106, %s107
      %p118 = scmp.eq.s32.totalorder %s32, 0
      %p119 = por %p117, %p118
      %p120 = scmp.ne.s32.totalorder %s106, %s107
      %p121 = scmp.eq.s32.totalorder %s33, 1
      %p122 = por %p120, %p121
      %p124 = scmp.ne.s32.totalorder %s107, %s123
      %p125 = scmp.eq.s32.totalorder %s33, 0
      %p126 = por %p124, %p125
      %s127 = ssub.s32 %s34, %s46
      %s128 = ssub.s32 %s35, %s42
      %s129 = sor.u32 %s127, %s128
      %p130 = scmp.eq.s32.totalorder %s129, 0
      %s132 = sadd.s32 %s131, 1
      %s133 = scalar_select %p130, %s131, %s132
      %p136 = pneg %p130
      %p137 = scmp.eq.s32.totalorder %s27, 1
      %p138 = por %p136, %p137
      %p139 = scmp.ne.s32.totalorder %s131, %s134
      %p140 = scmp.eq.s32.totalorder %s27, 0
      %p141 = por %p139, %p140
      %p142 = scmp.ne.s32.totalorder %s131, %s134
      %p143 = scmp.eq.s32.totalorder %s32, 1
      %p144 = por %p142, %p143
      %p145 = scmp.ne.s32.totalorder %s134, %s135
      %p146 = scmp.eq.s32.totalorder %s32, 0
      %p147 = por %p145, %p146
      %p148 = scmp.ne.s32.totalorder %s134, %s135
      %p149 = scmp.eq.s32.totalorder %s33, 1
      %p150 = por %p148, %p149
      %p152 = scmp.ne.s32.totalorder %s135, %s151
      %p153 = scmp.eq.s32.totalorder %s33, 0
      %p154 = por %p152, %p153
      %s155 = ssub.s32 %s34, %s46
      %s156 = ssub.s32 %s35, %s42
      %s157 = sor.u32 %s155, %s156
      %p158 = scmp.eq.s32.totalorder %s157, 0
      %s160 = sadd.s32 %s159, 1
      %s161 = scalar_select %p158, %s159, %s160
      %p164 = pneg %p158
      %p165 = scmp.eq.s32.totalorder %s27, 1
      %p166 = por %p164, %p165
      %p167 = scmp.ne.s32.totalorder %s159, %s162
      %p168 = scmp.eq.s32.totalorder %s27, 0
      %p169 = por %p167, %p168
      %p170 = scmp.ne.s32.totalorder %s159, %s162
      %p171 = scmp.eq.s32.totalorder %s32, 1
      %p172 = por %p170, %p171
      %p173 = scmp.ne.s32.totalorder %s162, %s163
      %p174 = scmp.eq.s32.totalorder %s32, 0
      %p175 = por %p173, %p174
      %p176 = scmp.ne.s32.totalorder %s162, %s163
      %p177 = scmp.eq.s32.totalorder %s33, 1
      %p178 = por %p176, %p177
      %p180 = scmp.ne.s32.totalorder %s163, %s179
      %p181 = scmp.eq.s32.totalorder %s33, 0
      %p182 = por %p180, %p181
      %s183 = ssub.s32 %s34, %s46
      %s184 = ssub.s32 %s35, %s42
      %s185 = sor.u32 %s183, %s184
      %p186 = scmp.eq.s32.totalorder %s185, 0
      %s188 = sadd.s32 %s187, 1
      %s189 = scalar_select %p186, %s187, %s188
      %p192 = pneg %p186
      %p193 = scmp.eq.s32.totalorder %s27, 1
      %p194 = por %p192, %p193
      %p195 = scmp.ne.s32.totalorder %s187, %s190
      %p196 = scmp.eq.s32.totalorder %s27, 0
      %p197 = por %p195, %p196
      %p198 = scmp.ne.s32.totalorder %s187, %s190
      %p199 = scmp.eq.s32.totalorder %s32, 1
      %p200 = por %p198, %p199
      %p201 = scmp.ne.s32.totalorder %s190, %s191
      %p202 = scmp.eq.s32.totalorder %s32, 0
      %p203 = por %p201, %p202
      %p204 = scmp.ne.s32.totalorder %s190, %s191
      %p205 = scmp.eq.s32.totalorder %s33, 1
      %p206 = por %p204, %p205
      %p208 = scmp.ne.s32.totalorder %s191, %s207
      %p209 = scmp.eq.s32.totalorder %s33, 0
      %p210 = por %p208, %p209
      %p211 = scmp.le.s32.totalorder 1, %s27
      %p212 = scmp.lt.s32.totalorder %s27, 3
      %p213 = pnand %p211, %p212
      %p214 = pneg %p213
      // Predicated region
      $region9: #{tpu_custom_call.1} parent=5 // pred_check
        _
      $region10: #{tpu_custom_call.1} parent=5 // pred_check_branch
        %216 = sbr.rel (%p213) target = $region12
      $region11: #{tpu_custom_call.1} parent=5 // pred_region
        %s217 = ssub.s32 %s27, 1
      $region12: #{tpu_custom_call.1} parent=5 // pred_fallthru
        _
      %p218 = scmp.lt.s32.totalorder %s27, 2
      // Predicated region
      $region13: #{tpu_custom_call.1} parent=5 // pred_check
        %p219 = pneg %p218
      $region14: #{tpu_custom_call.1} parent=5 // pred_check_branch
        %221 = sbr.rel (%p219) target = $region16
      $region15: #{tpu_custom_call.1} parent=5 // pred_region
        // Predicated region
        $region17: #{tpu_custom_call.1} parent=15 // pred_check
          %p222 = pneg %p61
        $region18: #{tpu_custom_call.1} parent=15 // pred_check_branch
          %224 = sbr.rel (%p222) target = $region20
        $region19: #{tpu_custom_call.1} parent=15 // pred_region
          %s225 = sand.u32 %s51, 1
          %s226 = scalar_lea.sflag [#allocation3], %s225
          %s227 = sand.u32 %s51, 1
          %s228 = smul.addr %s227, 32
          %s229 = scalar_lea.vmem [#allocation2], %s228
          %s230 = smul.u32 4, %s34
          %s232 = ssub.s32 512, 512
          %233 = vsyncadd %s226, %s232
          %s234 = sadd.s32 %s35, %s230
          %s235 = smul.addr %s234, 128
          %s236 = scalar_lea.hbm %s0, %s235
          %s237 = sshll.u32 %s229, 4
          %s238 = int_to_ptr.vmem [resolvable:$true] %s237
          %243 = dma.hbm_to_vmem [thread:$0]  %s236, 512, %s238, %s226, 128, 128, 8
        $region20: #{tpu_custom_call.1} parent=15 // pred_fallthru
          _
        // Predicated region
        $region21: #{tpu_custom_call.1} parent=15 // pred_check
          %p244 = pneg %p87
        $region22: #{tpu_custom_call.1} parent=15 // pred_check_branch
          %246 = sbr.rel (%p244) target = $region24
        $region23: #{tpu_custom_call.1} parent=15 // pred_region
          %s247 = sand.u32 %s27, 1
          %s248 = scalar_lea.sflag [#allocation6], %s247
          %s249 = sand.u32 %s77, 1
          %s250 = smul.addr %s249, 32
          %s251 = scalar_lea.vmem [#allocation5], %s250
          %s252 = smul.u32 4, %s34
          %s254 = ssub.s32 512, 512
          %255 = vsyncadd %s248, %s254
          %s256 = smul.addr %s252, 128
          %s257 = scalar_lea.hbm %s1, %s256
          %s258 = sshll.u32 %s251, 4
          %s259 = int_to_ptr.vmem [resolvable:$true] %s258
          %264 = dma.hbm_to_vmem [thread:$0]  %s257, 512, %s259, %s248, 128, 128, 8
        $region24: #{tpu_custom_call.1} parent=15 // pred_fallthru
          _
        // Predicated region
        $region25: #{tpu_custom_call.1} parent=15 // pred_check
          %p265 = pneg %p113
        $region26: #{tpu_custom_call.1} parent=15 // pred_check_branch
          %267 = sbr.rel (%p265) target = $region28
        $region27: #{tpu_custom_call.1} parent=15 // pred_region
          %s268 = sand.u32 %s27, 1
          %s269 = scalar_lea.sflag [#allocation6], %s268
          %s270 = sand.u32 %s103, 1
          %s271 = smul.addr %s270, 32
          %s272 = scalar_lea.vmem [#allocation7], %s271
          %s273 = smul.u32 4, %s34
          %s275 = ssub.s32 512, 512
          %276 = vsyncadd %s269, %s275
          %s277 = smul.addr %s273, 128
          %s278 = scalar_lea.hbm %s2, %s277
          %s279 = sshll.u32 %s272, 4
          %s280 = int_to_ptr.vmem [resolvable:$true] %s279
          %285 = dma.hbm_to_vmem [thread:$0]  %s278, 512, %s280, %s269, 128, 128, 8
        $region28: #{tpu_custom_call.1} parent=15 // pred_fallthru
          _
        // Predicated region
        $region29: #{tpu_custom_call.1} parent=15 // pred_check
          %p286 = pneg %p141
        $region30: #{tpu_custom_call.1} parent=15 // pred_check_branch
          %288 = sbr.rel (%p286) target = $region32
        $region31: #{tpu_custom_call.1} parent=15 // pred_region
          %s289 = sand.u32 %s131, 1
          %s290 = scalar_lea.sflag [#allocation9], %s289
          %s291 = sand.u32 %s131, 1
          %s292 = smul.addr %s291, 32
          %s293 = scalar_lea.vmem [#allocation8], %s292
          %s294 = smul.u32 4, %s34
          %s296 = ssub.s32 512, 512
          %297 = vsyncadd %s290, %s296
          %s298 = sadd.s32 %s35, %s294
          %s299 = smul.addr %s298, 128
          %s300 = scalar_lea.hbm %s3, %s299
          %s301 = sshll.u32 %s293, 4
          %s302 = int_to_ptr.vmem [resolvable:$true] %s301
          %307 = dma.hbm_to_vmem [thread:$0]  %s300, 512, %s302, %s290, 128, 128, 8
        $region32: #{tpu_custom_call.1} parent=15 // pred_fallthru
          _
      $region16: #{tpu_custom_call.1} parent=5 // pred_fallthru
        _
      %p308 = scmp.le.s32.totalorder 1, %s27
      %p309 = scmp.lt.s32.totalorder %s27, 3
      %p310 = pnand %p308, %p309
      %p311 = pneg %p310
      // Predicated region
      $region33: #{tpu_custom_call.1} parent=5 // pred_check
        _
      $region34: #{tpu_custom_call.1} parent=5 // pred_check_branch
        %313 = sbr.rel (%p310) target = $region36
      $region35: #{tpu_custom_call.1} parent=5 // pred_region
        %s314 = ssub.s32 %s27, 1
        %s315 = sand.u32 %s54, 1
        %s316 = scalar_lea.sflag [#allocation3], %s315
        %s317 = sand.u32 %s54, 1
        %s318 = smul.addr %s317, 32
        %s319 = scalar_lea.vmem [#allocation2], %s318
        // Predicated region
        $region37: #{tpu_custom_call.1} parent=35 // pred_check
          %p320 = pneg %p67
        $region38: #{tpu_custom_call.1} parent=35 // pred_check_branch
          %322 = sbr.rel (%p320) target = $region40
        $region39: #{tpu_custom_call.1} parent=35 // pred_region
          %323 = dma.done %s316, 512
        $region40: #{tpu_custom_call.1} parent=35 // pred_fallthru
          _
        %s324 = sand.u32 %s32, 1
        %s325 = scalar_lea.sflag [#allocation6], %s324
        %s326 = sand.u32 %s80, 1
        %s327 = smul.addr %s326, 32
        %s328 = scalar_lea.vmem [#allocation5], %s327
        // Predicated region
        $region41: #{tpu_custom_call.1} parent=35 // pred_check
          %p329 = pneg %p93
        $region42: #{tpu_custom_call.1} parent=35 // pred_check_branch
          %331 = sbr.rel (%p329) target = $region44
        $region43: #{tpu_custom_call.1} parent=35 // pred_region
          %332 = dma.done %s325, 512
        $region44: #{tpu_custom_call.1} parent=35 // pred_fallthru
          _
        %s333 = sand.u32 %s32, 1
        %s334 = scalar_lea.sflag [#allocation6], %s333
        %s335 = sand.u32 %s106, 1
        %s336 = smul.addr %s335, 32
        %s337 = scalar_lea.vmem [#allocation7], %s336
        // Predicated region
        $region45: #{tpu_custom_call.1} parent=35 // pred_check
          %p338 = pneg %p119
        $region46: #{tpu_custom_call.1} parent=35 // pred_check_branch
          %340 = sbr.rel (%p338) target = $region48
        $region47: #{tpu_custom_call.1} parent=35 // pred_region
          %341 = dma.done %s334, 512
        $region48: #{tpu_custom_call.1} parent=35 // pred_fallthru
          _
        %s342 = sand.u32 %s134, 1
        %s343 = scalar_lea.sflag [#allocation9], %s342
        %s344 = sand.u32 %s134, 1
        %s345 = smul.addr %s344, 32
        %s346 = scalar_lea.vmem [#allocation8], %s345
        // Predicated region
        $region49: #{tpu_custom_call.1} parent=35 // pred_check
          %p347 = pneg %p147
        $region50: #{tpu_custom_call.1} parent=35 // pred_check_branch
          %349 = sbr.rel (%p347) target = $region52
        $region51: #{tpu_custom_call.1} parent=35 // pred_region
          %350 = dma.done %s343, 512
        $region52: #{tpu_custom_call.1} parent=35 // pred_fallthru
          _
        %s351 = sand.u32 %s54, 1
        %s352 = scalar_lea.sflag [#allocation3], %s351
        %s353 = sand.u32 %s54, 1
        %s354 = smul.addr %s353, 32
        %s355 = scalar_lea.vmem [#allocation2], %s354
        %p356 = pneg %p67
        %p357 = pneg %p64
        %s358 = sand.u32 %s32, 1
        %s359 = scalar_lea.sflag [#allocation6], %s358
        %s360 = sand.u32 %s80, 1
        %s361 = smul.addr %s360, 32
        %s362 = scalar_lea.vmem [#allocation5], %s361
        %p363 = pneg %p93
        %p364 = pneg %p90
        %s365 = sand.u32 %s32, 1
        %s366 = scalar_lea.sflag [#allocation6], %s365
        %s367 = sand.u32 %s106, 1
        %s368 = smul.addr %s367, 32
        %s369 = scalar_lea.vmem [#allocation7], %s368
        %p370 = pneg %p119
        %p371 = pneg %p116
        %s372 = sand.u32 %s134, 1
        %s373 = scalar_lea.sflag [#allocation9], %s372
        %s374 = sand.u32 %s134, 1
        %s375 = smul.addr %s374, 32
        %s376 = scalar_lea.vmem [#allocation8], %s375
        %p377 = pneg %p147
        %p378 = pneg %p144
        %p379 = pneg %p175
        %p380 = pneg %p172
        %s381 = sand.u32 %s162, 1
        %s382 = scalar_lea.sflag [#allocation4], %s381
        %s383 = sand.u32 %s162, 1
        %s384 = smul.addr %s383, 32
        %s385 = scalar_lea.vmem [#allocation10], %s384
        %p386 = pneg %p203
        %p387 = pneg %p200
        %s388 = sand.u32 %s190, 1
        %s389 = scalar_lea.sflag [#allocation12], %s388
        %s390 = sand.u32 %s190, 1
        %s391 = smul.addr %s390, 32
        %s392 = scalar_lea.vmem [#allocation11], %s391
        %s393 = smul.u32 4, %s36
        %s394 = smul.u32 4, %s36
        %s395 = smul.u32 4, %s36
        %s396 = smul.u32 4, %s36
        %s397 = smul.u32 4, %s36
        %s398 = smul.u32 4, %s36
        %v399 = vld [vmem:[%s319] sm:$0xff]
        %v400 = vld [vmem:[%s319 + $0x8] sm:$0xff]
        %v401 = vld [vmem:[%s319 + $0x10] sm:$0xff]
        %v402 = vld [vmem:[%s319 + $0x18] sm:$0xff]
        %v403 = vld [vmem:[%s328] sm:$0xff]
        %v404 = vld [vmem:[%s328 + $0x8] sm:$0xff]
        %v405 = vld [vmem:[%s328 + $0x10] sm:$0xff]
        %v406 = vld [vmem:[%s328 + $0x18] sm:$0xff]
        %v407 = vld [vmem:[%s337] sm:$0xff]
        %v408 = vld [vmem:[%s337 + $0x8] sm:$0xff]
        %v409 = vld [vmem:[%s337 + $0x10] sm:$0xff]
        %v410 = vld [vmem:[%s337 + $0x18] sm:$0xff]
        %vm411 = vcmask 261120
        %v413 = vsel %vm411, %v399, 0
        %v416 = vsel %vm411, %v403, 0
        %418 = vmatprep.subr.mxu0 0.0
        %419 = vmatpush1.xpose.msra.mxu0 0.0
        %420 = vmatprep.subr.mxu0 0.0
        %421 = vmatpush1.xpose.msra.mxu0 0.0
        %422 = vmatprep.subr.mxu0 0.0
        %423 = vmatpush1.xpose.msra.mxu0 0.0
        %424 = vmatprep.subr.mxu0 0.0
        %425 = vmatpush1.xpose.msra.mxu0 0.0
        %426 = vmatprep.subr.mxu0 0.0
        %427 = vmatpush1.xpose.msra.mxu0 0.0
        %428 = vmatprep.subr.mxu0 0.0
        %429 = vmatpush1.xpose.msra.mxu0 0.0
        %430 = vmatprep.subr.mxu0 0.0
        %431 = vmatpush1.xpose.msra.mxu0 0.0
        %432 = vmatprep.subr.mxu0 0.0
        %433 = vmatpush1.xpose.msra.mxu0 0.0
        %434 = vmatprep.subr.mxu0 0.0
        %435 = vmatpush1.xpose.msra.mxu0 0.0
        %436 = vmatprep.subr.mxu0 0.0
        %437 = vmatpush1.xpose.msra.mxu0 0.0
        %438 = vmatprep.subr.mxu0 0.0
        %439 = vmatpush1.xpose.msra.mxu0 0.0
        %440 = vmatprep.subr.mxu0 0.0
        %441 = vmatpush1.xpose.msra.mxu0 0.0
        %442 = vmatprep.subr.mxu0 0.0
        %443 = vmatpush1.xpose.msra.mxu0 0.0
        %444 = vmatprep.subr.mxu0 0.0
        %445 = vmatpush1.xpose.msra.mxu0 0.0
        %446 = vmatprep.subr.mxu0 0.0
        %447 = vmatpush1.xpose.msra.mxu0 0.0
        %448 = vmatprep.subr.mxu0 0.0
        %449 = vmatpush1.xpose.msra.mxu0 %v416
        %450 = vmatprep.subr.mxu0 0.0
        %451 = vmatpush2.xpose.msra.mxu0 0.0
        %452 = vmatprep.subr.mxu0 0.0
        %453 = vmatpush2.xpose.msra.mxu0 0.0
        %454 = vmatprep.subr.mxu0 0.0
        %455 = vmatpush2.xpose.msra.mxu0 0.0
        %456 = vmatprep.subr.mxu0 0.0
        %457 = vmatpush2.xpose.msra.mxu0 0.0
        %458 = vmatprep.subr.mxu0 0.0
        %459 = vmatpush2.xpose.msra.mxu0 0.0
        %460 = vmatprep.subr.mxu0 0.0
        %461 = vmatpush2.xpose.msra.mxu0 0.0
        %462 = vmatprep.subr.mxu0 0.0
        %463 = vmatpush2.xpose.msra.mxu0 0.0
        %464 = vmatprep.subr.mxu0 0.0
        %465 = vmatpush2.xpose.msra.mxu0 0.0
        %466 = vmatprep.subr.mxu0 0.0
        %467 = vmatpush2.xpose.msra.mxu0 0.0
        %468 = vmatprep.subr.mxu0 0.0
        %469 = vmatpush2.xpose.msra.mxu0 0.0
        %470 = vmatprep.subr.mxu0 0.0
        %471 = vmatpush2.xpose.msra.mxu0 0.0
        %472 = vmatprep.subr.mxu0 0.0
        %473 = vmatpush2.xpose.msra.mxu0 0.0
        %474 = vmatprep.subr.mxu0 0.0
        %475 = vmatpush2.xpose.msra.mxu0 0.0
        %476 = vmatprep.subr.mxu0 0.0
        %477 = vmatpush2.xpose.msra.mxu0 0.0
        %478 = vmatprep.subr.mxu0 0.0
        %479 = vmatpush2.xpose.msra.mxu0 0.0
        %480 = vmatprep.subr.mxu0 0.0
        %481 = vmatpush2.xpose.msra.mxu0 0.0
        %482 = vmatprep.mubr.f32.mxu0 0.0
        %483 = vmatmul.mubr.f32.gmra.mxu0 %v413
        %v484 = vpop.f32.mrf.mxu0
        %v485 = vadd.f32 0.0, %v484
        %v486 = vpop.f32.mrf.mxu0
        %487 = vdwg.mxu0
        %v489 = vsel %vm411, %v400, 0
        %v492 = vsel %vm411, %v404, 0
        %494 = vmatprep.subr.mxu0 0.0
        %495 = vmatpush1.xpose.msra.mxu0 0.0
        %496 = vmatprep.subr.mxu0 0.0
        %497 = vmatpush1.xpose.msra.mxu0 0.0
        %498 = vmatprep.subr.mxu0 0.0
        %499 = vmatpush1.xpose.msra.mxu0 0.0
        %500 = vmatprep.subr.mxu0 0.0
        %501 = vmatpush1.xpose.msra.mxu0 0.0
        %502 = vmatprep.subr.mxu0 0.0
        %503 = vmatpush1.xpose.msra.mxu0 0.0
        %504 = vmatprep.subr.mxu0 0.0
        %505 = vmatpush1.xpose.msra.mxu0 0.0
        %506 = vmatprep.subr.mxu0 0.0
        %507 = vmatpush1.xpose.msra.mxu0 0.0
        %508 = vmatprep.subr.mxu0 0.0
        %509 = vmatpush1.xpose.msra.mxu0 0.0
        %510 = vmatprep.subr.mxu0 0.0
        %511 = vmatpush1.xpose.msra.mxu0 0.0
        %512 = vmatprep.subr.mxu0 0.0
        %513 = vmatpush1.xpose.msra.mxu0 0.0
        %514 = vmatprep.subr.mxu0 0.0
        %515 = vmatpush1.xpose.msra.mxu0 0.0
        %516 = vmatprep.subr.mxu0 0.0
        %517 = vmatpush1.xpose.msra.mxu0 0.0
        %518 = vmatprep.subr.mxu0 0.0
        %519 = vmatpush1.xpose.msra.mxu0 0.0
        %520 = vmatprep.subr.mxu0 0.0
        %521 = vmatpush1.xpose.msra.mxu0 0.0
        %522 = vmatprep.subr.mxu0 0.0
        %523 = vmatpush1.xpose.msra.mxu0 0.0
        %524 = vmatprep.subr.mxu0 0.0
        %525 = vmatpush1.xpose.msra.mxu0 %v492
        %526 = vmatprep.subr.mxu0 0.0
        %527 = vmatpush2.xpose.msra.mxu0 0.0
        %528 = vmatprep.subr.mxu0 0.0
        %529 = vmatpush2.xpose.msra.mxu0 0.0
        %530 = vmatprep.subr.mxu0 0.0
        %531 = vmatpush2.xpose.msra.mxu0 0.0
        %532 = vmatprep.subr.mxu0 0.0
        %533 = vmatpush2.xpose.msra.mxu0 0.0
        %534 = vmatprep.subr.mxu0 0.0
        %535 = vmatpush2.xpose.msra.mxu0 0.0
        %536 = vmatprep.subr.mxu0 0.0
        %537 = vmatpush2.xpose.msra.mxu0 0.0
        %538 = vmatprep.subr.mxu0 0.0
        %539 = vmatpush2.xpose.msra.mxu0 0.0
        %540 = vmatprep.subr.mxu0 0.0
        %541 = vmatpush2.xpose.msra.mxu0 0.0
        %542 = vmatprep.subr.mxu0 0.0
        %543 = vmatpush2.xpose.msra.mxu0 0.0
        %544 = vmatprep.subr.mxu0 0.0
        %545 = vmatpush2.xpose.msra.mxu0 0.0
        %546 = vmatprep.subr.mxu0 0.0
        %547 = vmatpush2.xpose.msra.mxu0 0.0
        %548 = vmatprep.subr.mxu0 0.0
        %549 = vmatpush2.xpose.msra.mxu0 0.0
        %550 = vmatprep.subr.mxu0 0.0
        %551 = vmatpush2.xpose.msra.mxu0 0.0
        %552 = vmatprep.subr.mxu0 0.0
        %553 = vmatpush2.xpose.msra.mxu0 0.0
        %554 = vmatprep.subr.mxu0 0.0
        %555 = vmatpush2.xpose.msra.mxu0 0.0
        %556 = vmatprep.subr.mxu0 0.0
        %557 = vmatpush2.xpose.msra.mxu0 0.0
        %558 = vmatprep.mubr.f32.mxu0 0.0
        %559 = vmatmul.mubr.f32.gmra.mxu0 %v489
        %v560 = vpop.f32.mrf.mxu0
        %v561 = vadd.f32 0.0, %v560
        %v562 = vpop.f32.mrf.mxu0
        %563 = vdwg.mxu0
        %v565 = vsel %vm411, %v401, 0
        %v568 = vsel %vm411, %v405, 0
        %570 = vmatprep.subr.mxu0 0.0
        %571 = vmatpush1.xpose.msra.mxu0 0.0
        %572 = vmatprep.subr.mxu0 0.0
        %573 = vmatpush1.xpose.msra.mxu0 0.0
        %574 = vmatprep.subr.mxu0 0.0
        %575 = vmatpush1.xpose.msra.mxu0 0.0
        %576 = vmatprep.subr.mxu0 0.0
        %577 = vmatpush1.xpose.msra.mxu0 0.0
        %578 = vmatprep.subr.mxu0 0.0
        %579 = vmatpush1.xpose.msra.mxu0 0.0
        %580 = vmatprep.subr.mxu0 0.0
        %581 = vmatpush1.xpose.msra.mxu0 0.0
        %582 = vmatprep.subr.mxu0 0.0
        %583 = vmatpush1.xpose.msra.mxu0 0.0
        %584 = vmatprep.subr.mxu0 0.0
        %585 = vmatpush1.xpose.msra.mxu0 0.0
        %586 = vmatprep.subr.mxu0 0.0
        %587 = vmatpush1.xpose.msra.mxu0 0.0
        %588 = vmatprep.subr.mxu0 0.0
        %589 = vmatpush1.xpose.msra.mxu0 0.0
        %590 = vmatprep.subr.mxu0 0.0
        %591 = vmatpush1.xpose.msra.mxu0 0.0
        %592 = vmatprep.subr.mxu0 0.0
        %593 = vmatpush1.xpose.msra.mxu0 0.0
        %594 = vmatprep.subr.mxu0 0.0
        %595 = vmatpush1.xpose.msra.mxu0 0.0
        %596 = vmatprep.subr.mxu0 0.0
        %597 = vmatpush1.xpose.msra.mxu0 0.0
        %598 = vmatprep.subr.mxu0 0.0
        %599 = vmatpush1.xpose.msra.mxu0 0.0
        %600 = vmatprep.subr.mxu0 0.0
        %601 = vmatpush1.xpose.msra.mxu0 %v568
        %602 = vmatprep.subr.mxu0 0.0
        %603 = vmatpush2.xpose.msra.mxu0 0.0
        %604 = vmatprep.subr.mxu0 0.0
        %605 = vmatpush2.xpose.msra.mxu0 0.0
        %606 = vmatprep.subr.mxu0 0.0
        %607 = vmatpush2.xpose.msra.mxu0 0.0
        %608 = vmatprep.subr.mxu0 0.0
        %609 = vmatpush2.xpose.msra.mxu0 0.0
        %610 = vmatprep.subr.mxu0 0.0
        %611 = vmatpush2.xpose.msra.mxu0 0.0
        %612 = vmatprep.subr.mxu0 0.0
        %613 = vmatpush2.xpose.msra.mxu0 0.0
        %614 = vmatprep.subr.mxu0 0.0
        %615 = vmatpush2.xpose.msra.mxu0 0.0
        %616 = vmatprep.subr.mxu0 0.0
        %617 = vmatpush2.xpose.msra.mxu0 0.0
        %618 = vmatprep.subr.mxu0 0.0
        %619 = vmatpush2.xpose.msra.mxu0 0.0
        %620 = vmatprep.subr.mxu0 0.0
        %621 = vmatpush2.xpose.msra.mxu0 0.0
        %622 = vmatprep.subr.mxu0 0.0
        %623 = vmatpush2.xpose.msra.mxu0 0.0
        %624 = vmatprep.subr.mxu0 0.0
        %625 = vmatpush2.xpose.msra.mxu0 0.0
        %626 = vmatprep.subr.mxu0 0.0
        %627 = vmatpush2.xpose.msra.mxu0 0.0
        %628 = vmatprep.subr.mxu0 0.0
        %629 = vmatpush2.xpose.msra.mxu0 0.0
        %630 = vmatprep.subr.mxu0 0.0
        %631 = vmatpush2.xpose.msra.mxu0 0.0
        %632 = vmatprep.subr.mxu0 0.0
        %633 = vmatpush2.xpose.msra.mxu0 0.0
        %634 = vmatprep.mubr.f32.mxu0 0.0
        %635 = vmatmul.mubr.f32.gmra.mxu0 %v565
        %v636 = vpop.f32.mrf.mxu0
        %v637 = vadd.f32 0.0, %v636
        %v638 = vpop.f32.mrf.mxu0
        %639 = vdwg.mxu0
        %v641 = vsel %vm411, %v402, 0
        %v644 = vsel %vm411, %v406, 0
        %646 = vmatprep.subr.mxu0 0.0
        %647 = vmatpush1.xpose.msra.mxu0 0.0
        %648 = vmatprep.subr.mxu0 0.0
        %649 = vmatpush1.xpose.msra.mxu0 0.0
        %650 = vmatprep.subr.mxu0 0.0
        %651 = vmatpush1.xpose.msra.mxu0 0.0
        %652 = vmatprep.subr.mxu0 0.0
        %653 = vmatpush1.xpose.msra.mxu0 0.0
        %654 = vmatprep.subr.mxu0 0.0
        %655 = vmatpush1.xpose.msra.mxu0 0.0
        %656 = vmatprep.subr.mxu0 0.0
        %657 = vmatpush1.xpose.msra.mxu0 0.0
        %658 = vmatprep.subr.mxu0 0.0
        %659 = vmatpush1.xpose.msra.mxu0 0.0
        %660 = vmatprep.subr.mxu0 0.0
        %661 = vmatpush1.xpose.msra.mxu0 0.0
        %662 = vmatprep.subr.mxu0 0.0
        %663 = vmatpush1.xpose.msra.mxu0 0.0
        %664 = vmatprep.subr.mxu0 0.0
        %665 = vmatpush1.xpose.msra.mxu0 0.0
        %666 = vmatprep.subr.mxu0 0.0
        %667 = vmatpush1.xpose.msra.mxu0 0.0
        %668 = vmatprep.subr.mxu0 0.0
        %669 = vmatpush1.xpose.msra.mxu0 0.0
        %670 = vmatprep.subr.mxu0 0.0
        %671 = vmatpush1.xpose.msra.mxu0 0.0
        %672 = vmatprep.subr.mxu0 0.0
        %673 = vmatpush1.xpose.msra.mxu0 0.0
        %674 = vmatprep.subr.mxu0 0.0
        %675 = vmatpush1.xpose.msra.mxu0 0.0
        %676 = vmatprep.subr.mxu0 0.0
        %677 = vmatpush1.xpose.msra.mxu0 %v644
        %678 = vmatprep.subr.mxu0 0.0
        %679 = vmatpush2.xpose.msra.mxu0 0.0
        %680 = vmatprep.subr.mxu0 0.0
        %681 = vmatpush2.xpose.msra.mxu0 0.0
        %682 = vmatprep.subr.mxu0 0.0
        %683 = vmatpush2.xpose.msra.mxu0 0.0
        %684 = vmatprep.subr.mxu0 0.0
        %685 = vmatpush2.xpose.msra.mxu0 0.0
        %686 = vmatprep.subr.mxu0 0.0
        %687 = vmatpush2.xpose.msra.mxu0 0.0
        %688 = vmatprep.subr.mxu0 0.0
        %689 = vmatpush2.xpose.msra.mxu0 0.0
        %690 = vmatprep.subr.mxu0 0.0
        %691 = vmatpush2.xpose.msra.mxu0 0.0
        %692 = vmatprep.subr.mxu0 0.0
        %693 = vmatpush2.xpose.msra.mxu0 0.0
        %694 = vmatprep.subr.mxu0 0.0
        %695 = vmatpush2.xpose.msra.mxu0 0.0
        %696 = vmatprep.subr.mxu0 0.0
        %697 = vmatpush2.xpose.msra.mxu0 0.0
        %698 = vmatprep.subr.mxu0 0.0
        %699 = vmatpush2.xpose.msra.mxu0 0.0
        %700 = vmatprep.subr.mxu0 0.0
        %701 = vmatpush2.xpose.msra.mxu0 0.0
        %702 = vmatprep.subr.mxu0 0.0
        %703 = vmatpush2.xpose.msra.mxu0 0.0
        %704 = vmatprep.subr.mxu0 0.0
        %705 = vmatpush2.xpose.msra.mxu0 0.0
        %706 = vmatprep.subr.mxu0 0.0
        %707 = vmatpush2.xpose.msra.mxu0 0.0
        %708 = vmatprep.subr.mxu0 0.0
        %709 = vmatpush2.xpose.msra.mxu0 0.0
        %710 = vmatprep.mubr.f32.mxu0 0.0
        %711 = vmatmul.mubr.f32.gmra.mxu0 %v641
        %v712 = vpop.f32.mrf.mxu0
        %v713 = vadd.f32 0.0, %v712
        %v714 = vpop.f32.mrf.mxu0
        %715 = vdwg.mxu0
        %v716 = vmul.f32 %v485, 0.17677669
        %v717 = vmul.f32 %v561, 0.17677669
        %v718 = vmul.f32 %v637, 0.17677669
        %v719 = vmul.f32 %v713, 0.17677669
        %v720 = vld [vmem:[%s346] sm:$0xff]
        %v721 = vld [vmem:[%s346 + $0x8] sm:$0xff]
        %v722 = vld [vmem:[%s346 + $0x10] sm:$0xff]
        %v723 = vld [vmem:[%s346 + $0x18] sm:$0xff]
        %vm724 = vcmp.eq.f32.partialorder %v720, 0.0
        %vm725 = vcmp.eq.f32.partialorder %v721, 0.0
        %vm726 = vcmp.eq.f32.partialorder %v722, 0.0
        %vm727 = vcmp.eq.f32.partialorder %v723, 0.0
        %v728 = vsel %vm724, -1e+09, %v716
        %v729 = vsel %vm725, -1e+09, %v717
        %v730 = vsel %vm726, -1e+09, %v718
        %v731 = vsel %vm727, -1e+09, %v719
        %vm732 = vcmask 64512
        %v733 = vsel %vm732, %v728, -inf
        %734 = vmax.xlane.f32.xlu0 %v733
        %v735 = vpop.xlane.xlu0 %734
        %v736 = vsel %vm732, %v729, -inf
        %737 = vmax.xlane.f32.xlu0 %v736
        %v738 = vpop.xlane.xlu0 %737
        %v739 = vsel %vm732, %v730, -inf
        %740 = vmax.xlane.f32.xlu0 %v739
        %v741 = vpop.xlane.xlu0 %740
        %v742 = vsel %vm732, %v731, -inf
        %743 = vmax.xlane.f32.xlu0 %v742
        %v744 = vpop.xlane.xlu0 %743
        %v745 = vsub.f32 %v728, %v735
        %v746 = vsub.f32 %v729, %v738
        %v747 = vsub.f32 %v730, %v741
        %v748 = vsub.f32 %v731, %v744
        %v749 = vmul.f32 %v745, 1.442695
        %v750 = vpow.pop %v749
        %v751 = vmul.f32 %v746, 1.442695
        %v752 = vpow.pop %v751
        %v753 = vmul.f32 %v747, 1.442695
        %v754 = vpow.pop %v753
        %v755 = vmul.f32 %v748, 1.442695
        %v756 = vpow.pop %v755
        %v757 = vsel %vm732, %v750, 0.0
        %758 = vadd.xlane.f32.xlu0 %v757
        %v759 = vpop.xlane.xlu0 %758
        %v760 = vsel %vm732, %v752, 0.0
        %761 = vadd.xlane.f32.xlu0 %v760
        %v762 = vpop.xlane.xlu0 %761
        %v763 = vsel %vm732, %v754, 0.0
        %764 = vadd.xlane.f32.xlu0 %v763
        %v765 = vpop.xlane.xlu0 %764
        %v766 = vsel %vm732, %v756, 0.0
        %767 = vadd.xlane.f32.xlu0 %v766
        %v768 = vpop.xlane.xlu0 %767
        %v769 = vrcp.pop %v759
        %v770 = vrcp.pop %v762
        %v771 = vrcp.pop %v765
        %v772 = vrcp.pop %v768
        %v773 = vmul.f32 %v759, %v769
        %v774 = vmul.f32 %v762, %v770
        %v775 = vmul.f32 %v765, %v771
        %v776 = vmul.f32 %v768, %v772
        %v777 = vsub.f32 2.0, %v773
        %v778 = vsub.f32 2.0, %v774
        %v779 = vsub.f32 2.0, %v775
        %v780 = vsub.f32 2.0, %v776
        %v781 = vmul.f32 %v769, %v777
        %v782 = vmul.f32 %v770, %v778
        %v783 = vmul.f32 %v771, %v779
        %v784 = vmul.f32 %v772, %v780
        %v785 = vmul.f32 %v750, %v781
        %v786 = vmul.f32 %v752, %v782
        %v787 = vmul.f32 %v754, %v783
        %v788 = vmul.f32 %v756, %v784
        %789 = vst.msk [vmem:[%s392] sm:$0xff] %vm732, %v785
        %790 = vst.msk [vmem:[%s392 + $0x8] sm:$0xff] %vm732, %v786
        %791 = vst.msk [vmem:[%s392 + $0x10] sm:$0xff] %vm732, %v787
        %792 = vst.msk [vmem:[%s392 + $0x18] sm:$0xff] %vm732, %v788
        %v794 = vsel %vm732, %v785, 0
        %796 = vmatprep.subr.mxu0 0.0
        %797 = vmatpush1.msra.mxu0 0.0
        %798 = vmatprep.subr.mxu0 0.0
        %799 = vmatpush1.msra.mxu0 0.0
        %800 = vmatprep.subr.mxu0 0.0
        %801 = vmatpush1.msra.mxu0 0.0
        %802 = vmatprep.subr.mxu0 0.0
        %803 = vmatpush1.msra.mxu0 0.0
        %804 = vmatprep.subr.mxu0 0.0
        %805 = vmatpush1.msra.mxu0 0.0
        %806 = vmatprep.subr.mxu0 0.0
        %807 = vmatpush1.msra.mxu0 0.0
        %808 = vmatprep.subr.mxu0 0.0
        %809 = vmatpush1.msra.mxu0 0.0
        %810 = vmatprep.subr.mxu0 0.0
        %811 = vmatpush1.msra.mxu0 0.0
        %812 = vmatprep.subr.mxu0 0.0
        %813 = vmatpush1.msra.mxu0 0.0
        %814 = vmatprep.subr.mxu0 0.0
        %815 = vmatpush1.msra.mxu0 0.0
        %816 = vmatprep.subr.mxu0 0.0
        %817 = vmatpush1.msra.mxu0 0.0
        %818 = vmatprep.subr.mxu0 0.0
        %819 = vmatpush1.msra.mxu0 0.0
        %820 = vmatprep.subr.mxu0 0.0
        %821 = vmatpush1.msra.mxu0 0.0
        %822 = vmatprep.subr.mxu0 0.0
        %823 = vmatpush1.msra.mxu0 0.0
        %824 = vmatprep.subr.mxu0 0.0
        %825 = vmatpush1.msra.mxu0 0.0
        %826 = vmatprep.subr.mxu0 0.0
        %827 = vmatpush1.msra.mxu0 %v407
        %828 = vmatprep.subr.mxu0 0.0
        %829 = vmatpush2.msra.mxu0 0.0
        %830 = vmatprep.subr.mxu0 0.0
        %831 = vmatpush2.msra.mxu0 0.0
        %832 = vmatprep.subr.mxu0 0.0
        %833 = vmatpush2.msra.mxu0 0.0
        %834 = vmatprep.subr.mxu0 0.0
        %835 = vmatpush2.msra.mxu0 0.0
        %836 = vmatprep.subr.mxu0 0.0
        %837 = vmatpush2.msra.mxu0 0.0
        %838 = vmatprep.subr.mxu0 0.0
        %839 = vmatpush2.msra.mxu0 0.0
        %840 = vmatprep.subr.mxu0 0.0
        %841 = vmatpush2.msra.mxu0 0.0
        %842 = vmatprep.subr.mxu0 0.0
        %843 = vmatpush2.msra.mxu0 0.0
        %844 = vmatprep.subr.mxu0 0.0
        %845 = vmatpush2.msra.mxu0 0.0
        %846 = vmatprep.subr.mxu0 0.0
        %847 = vmatpush2.msra.mxu0 0.0
        %848 = vmatprep.subr.mxu0 0.0
        %849 = vmatpush2.msra.mxu0 0.0
        %850 = vmatprep.subr.mxu0 0.0
        %851 = vmatpush2.msra.mxu0 0.0
        %852 = vmatprep.subr.mxu0 0.0
        %853 = vmatpush2.msra.mxu0 0.0
        %854 = vmatprep.subr.mxu0 0.0
        %855 = vmatpush2.msra.mxu0 0.0
        %856 = vmatprep.subr.mxu0 0.0
        %857 = vmatpush2.msra.mxu0 0.0
        %858 = vmatprep.subr.mxu0 0.0
        %859 = vmatpush2.msra.mxu0 0.0
        %860 = vmatprep.mubr.f32.mxu0 0.0
        %861 = vmatmul.mubr.f32.gmra.mxu0 %v794
        %v862 = vpop.f32.mrf.mxu0
        %v863 = vadd.f32 0.0, %v862
        %v864 = vpop.f32.mrf.mxu0
        %865 = vdwg.mxu0
        %v867 = vsel %vm732, %v786, 0
        %869 = vmatprep.subr.mxu0 0.0
        %870 = vmatpush1.msra.mxu0 0.0
        %871 = vmatprep.subr.mxu0 0.0
        %872 = vmatpush1.msra.mxu0 0.0
        %873 = vmatprep.subr.mxu0 0.0
        %874 = vmatpush1.msra.mxu0 0.0
        %875 = vmatprep.subr.mxu0 0.0
        %876 = vmatpush1.msra.mxu0 0.0
        %877 = vmatprep.subr.mxu0 0.0
        %878 = vmatpush1.msra.mxu0 0.0
        %879 = vmatprep.subr.mxu0 0.0
        %880 = vmatpush1.msra.mxu0 0.0
        %881 = vmatprep.subr.mxu0 0.0
        %882 = vmatpush1.msra.mxu0 0.0
        %883 = vmatprep.subr.mxu0 0.0
        %884 = vmatpush1.msra.mxu0 0.0
        %885 = vmatprep.subr.mxu0 0.0
        %886 = vmatpush1.msra.mxu0 0.0
        %887 = vmatprep.subr.mxu0 0.0
        %888 = vmatpush1.msra.mxu0 0.0
        %889 = vmatprep.subr.mxu0 0.0
        %890 = vmatpush1.msra.mxu0 0.0
        %891 = vmatprep.subr.mxu0 0.0
        %892 = vmatpush1.msra.mxu0 0.0
        %893 = vmatprep.subr.mxu0 0.0
        %894 = vmatpush1.msra.mxu0 0.0
        %895 = vmatprep.subr.mxu0 0.0
        %896 = vmatpush1.msra.mxu0 0.0
        %897 = vmatprep.subr.mxu0 0.0
        %898 = vmatpush1.msra.mxu0 0.0
        %899 = vmatprep.subr.mxu0 0.0
        %900 = vmatpush1.msra.mxu0 %v408
        %901 = vmatprep.subr.mxu0 0.0
        %902 = vmatpush2.msra.mxu0 0.0
        %903 = vmatprep.subr.mxu0 0.0
        %904 = vmatpush2.msra.mxu0 0.0
        %905 = vmatprep.subr.mxu0 0.0
        %906 = vmatpush2.msra.mxu0 0.0
        %907 = vmatprep.subr.mxu0 0.0
        %908 = vmatpush2.msra.mxu0 0.0
        %909 = vmatprep.subr.mxu0 0.0
        %910 = vmatpush2.msra.mxu0 0.0
        %911 = vmatprep.subr.mxu0 0.0
        %912 = vmatpush2.msra.mxu0 0.0
        %913 = vmatprep.subr.mxu0 0.0
        %914 = vmatpush2.msra.mxu0 0.0
        %915 = vmatprep.subr.mxu0 0.0
        %916 = vmatpush2.msra.mxu0 0.0
        %917 = vmatprep.subr.mxu0 0.0
        %918 = vmatpush2.msra.mxu0 0.0
        %919 = vmatprep.subr.mxu0 0.0
        %920 = vmatpush2.msra.mxu0 0.0
        %921 = vmatprep.subr.mxu0 0.0
        %922 = vmatpush2.msra.mxu0 0.0
        %923 = vmatprep.subr.mxu0 0.0
        %924 = vmatpush2.msra.mxu0 0.0
        %925 = vmatprep.subr.mxu0 0.0
        %926 = vmatpush2.msra.mxu0 0.0
        %927 = vmatprep.subr.mxu0 0.0
        %928 = vmatpush2.msra.mxu0 0.0
        %929 = vmatprep.subr.mxu0 0.0
        %930 = vmatpush2.msra.mxu0 0.0
        %931 = vmatprep.subr.mxu0 0.0
        %932 = vmatpush2.msra.mxu0 0.0
        %933 = vmatprep.mubr.f32.mxu0 0.0
        %934 = vmatmul.mubr.f32.gmra.mxu0 %v867
        %v935 = vpop.f32.mrf.mxu0
        %v936 = vadd.f32 0.0, %v935
        %v937 = vpop.f32.mrf.mxu0
        %938 = vdwg.mxu0
        %v940 = vsel %vm732, %v787, 0
        %942 = vmatprep.subr.mxu0 0.0
        %943 = vmatpush1.msra.mxu0 0.0
        %944 = vmatprep.subr.mxu0 0.0
        %945 = vmatpush1.msra.mxu0 0.0
        %946 = vmatprep.subr.mxu0 0.0
        %947 = vmatpush1.msra.mxu0 0.0
        %948 = vmatprep.subr.mxu0 0.0
        %949 = vmatpush1.msra.mxu0 0.0
        %950 = vmatprep.subr.mxu0 0.0
        %951 = vmatpush1.msra.mxu0 0.0
        %952 = vmatprep.subr.mxu0 0.0
        %953 = vmatpush1.msra.mxu0 0.0
        %954 = vmatprep.subr.mxu0 0.0
        %955 = vmatpush1.msra.mxu0 0.0
        %956 = vmatprep.subr.mxu0 0.0
        %957 = vmatpush1.msra.mxu0 0.0
        %958 = vmatprep.subr.mxu0 0.0
        %959 = vmatpush1.msra.mxu0 0.0
        %960 = vmatprep.subr.mxu0 0.0
        %961 = vmatpush1.msra.mxu0 0.0
        %962 = vmatprep.subr.mxu0 0.0
        %963 = vmatpush1.msra.mxu0 0.0
        %964 = vmatprep.subr.mxu0 0.0
        %965 = vmatpush1.msra.mxu0 0.0
        %966 = vmatprep.subr.mxu0 0.0
        %967 = vmatpush1.msra.mxu0 0.0
        %968 = vmatprep.subr.mxu0 0.0
        %969 = vmatpush1.msra.mxu0 0.0
        %970 = vmatprep.subr.mxu0 0.0
        %971 = vmatpush1.msra.mxu0 0.0
        %972 = vmatprep.subr.mxu0 0.0
        %973 = vmatpush1.msra.mxu0 %v409
        %974 = vmatprep.subr.mxu0 0.0
        %975 = vmatpush2.msra.mxu0 0.0
        %976 = vmatprep.subr.mxu0 0.0
        %977 = vmatpush2.msra.mxu0 0.0
        %978 = vmatprep.subr.mxu0 0.0
        %979 = vmatpush2.msra.mxu0 0.0
        %980 = vmatprep.subr.mxu0 0.0
        %981 = vmatpush2.msra.mxu0 0.0
        %982 = vmatprep.subr.mxu0 0.0
        %983 = vmatpush2.msra.mxu0 0.0
        %984 = vmatprep.subr.mxu0 0.0
        %985 = vmatpush2.msra.mxu0 0.0
        %986 = vmatprep.subr.mxu0 0.0
        %987 = vmatpush2.msra.mxu0 0.0
        %988 = vmatprep.subr.mxu0 0.0
        %989 = vmatpush2.msra.mxu0 0.0
        %990 = vmatprep.subr.mxu0 0.0
        %991 = vmatpush2.msra.mxu0 0.0
        %992 = vmatprep.subr.mxu0 0.0
        %993 = vmatpush2.msra.mxu0 0.0
        %994 = vmatprep.subr.mxu0 0.0
        %995 = vmatpush2.msra.mxu0 0.0
        %996 = vmatprep.subr.mxu0 0.0
        %997 = vmatpush2.msra.mxu0 0.0
        %998 = vmatprep.subr.mxu0 0.0
        %999 = vmatpush2.msra.mxu0 0.0
        %1000 = vmatprep.subr.mxu0 0.0
        %1001 = vmatpush2.msra.mxu0 0.0
        %1002 = vmatprep.subr.mxu0 0.0
        %1003 = vmatpush2.msra.mxu0 0.0
        %1004 = vmatprep.subr.mxu0 0.0
        %1005 = vmatpush2.msra.mxu0 0.0
        %1006 = vmatprep.mubr.f32.mxu0 0.0
        %1007 = vmatmul.mubr.f32.gmra.mxu0 %v940
        %v1008 = vpop.f32.mrf.mxu0
        %v1009 = vadd.f32 0.0, %v1008
        %v1010 = vpop.f32.mrf.mxu0
        %1011 = vdwg.mxu0
        %v1013 = vsel %vm732, %v788, 0
        %1015 = vmatprep.subr.mxu0 0.0
        %1016 = vmatpush1.msra.mxu0 0.0
        %1017 = vmatprep.subr.mxu0 0.0
        %1018 = vmatpush1.msra.mxu0 0.0
        %1019 = vmatprep.subr.mxu0 0.0
        %1020 = vmatpush1.msra.mxu0 0.0
        %1021 = vmatprep.subr.mxu0 0.0
        %1022 = vmatpush1.msra.mxu0 0.0
        %1023 = vmatprep.subr.mxu0 0.0
        %1024 = vmatpush1.msra.mxu0 0.0
        %1025 = vmatprep.subr.mxu0 0.0
        %1026 = vmatpush1.msra.mxu0 0.0
        %1027 = vmatprep.subr.mxu0 0.0
        %1028 = vmatpush1.msra.mxu0 0.0
        %1029 = vmatprep.subr.mxu0 0.0
        %1030 = vmatpush1.msra.mxu0 0.0
        %1031 = vmatprep.subr.mxu0 0.0
        %1032 = vmatpush1.msra.mxu0 0.0
        %1033 = vmatprep.subr.mxu0 0.0
        %1034 = vmatpush1.msra.mxu0 0.0
        %1035 = vmatprep.subr.mxu0 0.0
        %1036 = vmatpush1.msra.mxu0 0.0
        %1037 = vmatprep.subr.mxu0 0.0
        %1038 = vmatpush1.msra.mxu0 0.0
        %1039 = vmatprep.subr.mxu0 0.0
        %1040 = vmatpush1.msra.mxu0 0.0
        %1041 = vmatprep.subr.mxu0 0.0
        %1042 = vmatpush1.msra.mxu0 0.0
        %1043 = vmatprep.subr.mxu0 0.0
        %1044 = vmatpush1.msra.mxu0 0.0
        %1045 = vmatprep.subr.mxu0 0.0
        %1046 = vmatpush1.msra.mxu0 %v410
        %1047 = vmatprep.subr.mxu0 0.0
        %1048 = vmatpush2.msra.mxu0 0.0
        %1049 = vmatprep.subr.mxu0 0.0
        %1050 = vmatpush2.msra.mxu0 0.0
        %1051 = vmatprep.subr.mxu0 0.0
        %1052 = vmatpush2.msra.mxu0 0.0
        %1053 = vmatprep.subr.mxu0 0.0
        %1054 = vmatpush2.msra.mxu0 0.0
        %1055 = vmatprep.subr.mxu0 0.0
        %1056 = vmatpush2.msra.mxu0 0.0
        %1057 = vmatprep.subr.mxu0 0.0
        %1058 = vmatpush2.msra.mxu0 0.0
        %1059 = vmatprep.subr.mxu0 0.0
        %1060 = vmatpush2.msra.mxu0 0.0
        %1061 = vmatprep.subr.mxu0 0.0
        %1062 = vmatpush2.msra.mxu0 0.0
        %1063 = vmatprep.subr.mxu0 0.0
        %1064 = vmatpush2.msra.mxu0 0.0
        %1065 = vmatprep.subr.mxu0 0.0
        %1066 = vmatpush2.msra.mxu0 0.0
        %1067 = vmatprep.subr.mxu0 0.0
        %1068 = vmatpush2.msra.mxu0 0.0
        %1069 = vmatprep.subr.mxu0 0.0
        %1070 = vmatpush2.msra.mxu0 0.0
        %1071 = vmatprep.subr.mxu0 0.0
        %1072 = vmatpush2.msra.mxu0 0.0
        %1073 = vmatprep.subr.mxu0 0.0
        %1074 = vmatpush2.msra.mxu0 0.0
        %1075 = vmatprep.subr.mxu0 0.0
        %1076 = vmatpush2.msra.mxu0 0.0
        %1077 = vmatprep.subr.mxu0 0.0
        %1078 = vmatpush2.msra.mxu0 0.0
        %1079 = vmatprep.mubr.f32.mxu0 0.0
        %1080 = vmatmul.mubr.f32.gmra.mxu0 %v1013
        %v1081 = vpop.f32.mrf.mxu0
        %v1082 = vadd.f32 0.0, %v1081
        %v1083 = vpop.f32.mrf.mxu0
        %1084 = vdwg.mxu0
        %1085 = vst.msk [vmem:[%s385] sm:$0xff] %vm411, %v863
        %1086 = vst.msk [vmem:[%s385 + $0x8] sm:$0xff] %vm411, %v936
        %1087 = vst.msk [vmem:[%s385 + $0x10] sm:$0xff] %vm411, %v1009
        %1088 = vst.msk [vmem:[%s385 + $0x18] sm:$0xff] %vm411, %v1082
        %s1089 = sand.u32 %s162, 1
        %s1090 = scalar_lea.sflag [#allocation4], %s1089
        %s1091 = sand.u32 %s162, 1
        %s1092 = smul.addr %s1091, 32
        %s1093 = scalar_lea.vmem [#allocation10], %s1092
        %s1094 = sand.u32 %s190, 1
        %s1095 = scalar_lea.sflag [#allocation12], %s1094
        %s1096 = sand.u32 %s190, 1
        %s1097 = smul.addr %s1096, 32
        %s1098 = scalar_lea.vmem [#allocation11], %s1097
        // Predicated region
        $region53: #{tpu_custom_call.1} parent=35 // pred_check
          %p1099 = pneg %p172
        $region54: #{tpu_custom_call.1} parent=35 // pred_check_branch
          %1101 = sbr.rel (%p1099) target = $region56
        $region55: #{tpu_custom_call.1} parent=35 // pred_region
          %s1102 = smul.u32 4, %s36
          %s1104 = ssub.s32 512, 512
          %1105 = vsyncadd %s1090, %s1104
          %s1106 = sadd.s32 %s37, %s1102
          %s1107 = smul.addr %s1106, 128
          %s1108 = scalar_lea.hbm %s4, %s1107
          %s1109 = sshll.u32 %s1093, 4
          %s1110 = int_to_ptr.vmem [resolvable:$true] %s1109
          %1115 = dma.vmem_to_hbm [thread:$0]  %s1110, 512, %s1108, %s1090, 128, 128, 8
        $region56: #{tpu_custom_call.1} parent=35 // pred_fallthru
          _
        // Predicated region
        $region57: #{tpu_custom_call.1} parent=35 // pred_check
          %p1116 = pneg %p200
        $region58: #{tpu_custom_call.1} parent=35 // pred_check_branch
          %1118 = sbr.rel (%p1116) target = $region60
        $region59: #{tpu_custom_call.1} parent=35 // pred_region
          %s1119 = smul.u32 4, %s36
          %s1121 = ssub.s32 512, 512
          %1122 = vsyncadd %s1095, %s1121
          %s1123 = sadd.s32 %s37, %s1119
          %s1124 = smul.addr %s1123, 128
          %s1125 = scalar_lea.hbm %s5, %s1124
          %s1126 = sshll.u32 %s1098, 4
          %s1127 = int_to_ptr.vmem [resolvable:$true] %s1126
          %1132 = dma.vmem_to_hbm [thread:$0]  %s1127, 512, %s1125, %s1095, 128, 128, 8
        $region60: #{tpu_custom_call.1} parent=35 // pred_fallthru
          _
      $region36: #{tpu_custom_call.1} parent=5 // pred_fallthru
        _
      %p1133 = scmp.le.s32.totalorder 2, %s27
      // Predicated region
      $region61: #{tpu_custom_call.1} parent=5 // pred_check
        %p1134 = pneg %p1133
      $region62: #{tpu_custom_call.1} parent=5 // pred_check_branch
        %1136 = sbr.rel (%p1134) target = $region64
      $region63: #{tpu_custom_call.1} parent=5 // pred_region
        %s1137 = ssub.s32 %s27, 2
        // Predicated region
        $region65: #{tpu_custom_call.1} parent=63 // pred_check
          %p1138 = pneg %p178
        $region66: #{tpu_custom_call.1} parent=63 // pred_check_branch
          %1140 = sbr.rel (%p1138) target = $region68
        $region67: #{tpu_custom_call.1} parent=63 // pred_region
          %s1141 = sand.u32 %s163, 1
          %s1142 = scalar_lea.sflag [#allocation4], %s1141
          %s1143 = sand.u32 %s163, 1
          %s1144 = smul.addr %s1143, 32
          %s1145 = scalar_lea.vmem [#allocation10], %s1144
          %1146 = dma.done %s1142, 512
        $region68: #{tpu_custom_call.1} parent=63 // pred_fallthru
          _
        // Predicated region
        $region69: #{tpu_custom_call.1} parent=63 // pred_check
          %p1147 = pneg %p206
        $region70: #{tpu_custom_call.1} parent=63 // pred_check_branch
          %1149 = sbr.rel (%p1147) target = $region72
        $region71: #{tpu_custom_call.1} parent=63 // pred_region
          %s1150 = sand.u32 %s191, 1
          %s1151 = scalar_lea.sflag [#allocation12], %s1150
          %s1152 = sand.u32 %s191, 1
          %s1153 = smul.addr %s1152, 32
          %s1154 = scalar_lea.vmem [#allocation11], %s1153
          %1155 = dma.done %s1151, 512
        $region72: #{tpu_custom_call.1} parent=63 // pred_fallthru
          _
      $region64: #{tpu_custom_call.1} parent=5 // pred_fallthru
        _
    $region6: #{tpu_custom_call.1} parent=1 // loop_footer
      %s31 = sadd.s32 1, %s27
    $region7: #{tpu_custom_call.1} parent=1 // loop_footer_branch
      %26 = sbr.rel target = $region3
    $region8: #{tpu_custom_call.1} parent=1 // loop_exit
      _
    %1156 = vsyncpa [#allocation3], 1
    %s1157 = scalar_lea.sflag [#allocation3], 1
    %1158 = vsyncpa %s1157, 1
    %1159 = vsyncpa [#allocation6], 1
    %s1160 = scalar_lea.sflag [#allocation6], 1
    %1161 = vsyncpa %s1160, 1
    %1162 = vsyncpa [#allocation9], 1
    %s1163 = scalar_lea.sflag [#allocation9], 1
    %1164 = vsyncpa %s1163, 1
    %1165 = vsyncpa [#allocation4], 1
    %s1166 = scalar_lea.sflag [#allocation4], 1
    %1167 = vsyncpa %s1166, 1
    %1168 = vsyncpa [#allocation12], 1
    %s1169 = scalar_lea.sflag [#allocation12], 1
    %1170 = vsyncpa %s1169, 1

</llo_original>
